<compile_context>
chip_gen: v7x
topology: tpu7x:2x2x1
jax: 0.10.0
libtpu: 0.0.40
codegen_flags: <defaults>
</compile_context>

<pallas_src>
import functools

import jax
import jax.numpy as jnp
from jax.experimental import pallas as pl
from jax.experimental.pallas import tpu as pltpu


def _round_up(x, m):
    return ((x + m - 1) // m) * m


def _vmem_capacity_bytes():
    """Physical VMEM of the current TPU generation (conservative 64 MiB fallback)."""
    default = 64 * 1024 * 1024
    try:
        info = pltpu.get_tpu_info()
        return int(getattr(info, "vmem_capacity_bytes", default))
    except Exception:
        return default


def _powered_diff(x1_ref, x2_ref, p):
    x1 = x1_ref[...].astype(jnp.float32)
    x2 = x2_ref[...].astype(jnp.float32)
    d = x1 - x2
    if p == 2.0:
        return d * d                      # |d|^2 == d*d (abs is redundant)
    if p == 1.0:
        return jnp.abs(d)
    return jnp.abs(d) ** p                # generic float p (EUP exp/log path)


def _root(s, p):
    if p == 2.0:
        return jnp.sqrt(s)
    if p == 1.0:
        return s
    return s ** (1.0 / p)


def _pairwise_distance_kernel_single(x1_ref, x2_ref, out_ref, *, p, eps):
    """Single pass over the full feature dim: fused reduce + eps + root, no scratch."""
    powered = _powered_diff(x1_ref, x2_ref, p)
    # clamp(min=0) is mathematically a no-op on a sum of non-negative terms.
    s = jnp.sum(powered, axis=1, keepdims=True) + eps
    out_ref[...] = _root(s, p).astype(out_ref.dtype)


def _pairwise_distance_kernel_acc(x1_ref, x2_ref, out_ref, acc_ref, *,
                                  p, eps, d_total, td, mask_last):
    """Feature-tiled path: lane-dense (tb, 128) f32 accumulator across the k axis."""
    k = pl.program_id(1)

    @pl.when(k == 0)
    def _init():
        acc_ref[...] = jnp.zeros_like(acc_ref)

    powered = _powered_diff(x1_ref, x2_ref, p)

    if mask_last:
        # The last feature tile is ragged (D % td != 0): OOB columns hold unspecified data
        # and must be zeroed before the reduction.
        col = jax.lax.broadcasted_iota(jnp.int32, powered.shape, dimension=1)
        valid = (k * td + col) < d_total
        powered = jnp.where(valid, powered, 0.0)

    # Fold (tb, td) -> (tb, 128) with static 128-lane slices: pure VPU adds, no XLU,
    # no masked (tb, 1) read-modify-write in the hot loop.
    partial = powered[:, 0:128]
    for off in range(128, td, 128):
        partial = partial + powered[:, off:off + 128]
    acc_ref[...] += partial

    @pl.when(k == pl.num_programs(1) - 1)
    def _finalize():
        s = jnp.sum(acc_ref[...], axis=1, keepdims=True) + eps   # single cross-lane reduce
        out_ref[...] = _root(s, p).astype(out_ref.dtype)


def _choose_tiles(B, D, itemsize, per_block_budget):
    """Pick (tb, td); td == D means a single pass over the feature dim."""
    d_pad = _round_up(D, 128)            # lane-padded VMEM footprint of one full-D row
    b_eff = _round_up(B, 8)
    max_tb_full_d = max(8, (per_block_budget // (d_pad * itemsize)) // 8 * 8)

    if max_tb_full_d >= min(256, b_eff):
        # Full feature dim per block (single-pass kernel). Fill the budget with tb.
        tb = min(max_tb_full_d, b_eff)
        # v7x has two TensorCores: make sure the "parallel" batch axis has >= 2 blocks.
        if tb >= b_eff and b_eff >= 16:
            tb = _round_up(pl.cdiv(b_eff, 2), 8)
        td = D
    else:
        # Very large D: tile the feature dim too and accumulate across it.
        tb = min(512, b_eff)
        td_cap = max(128, (per_block_budget // (tb * itemsize)) // 128 * 128)
        td = min(td_cap, _round_up(D, 128))
    return tb, td


def pairwise_distance(x1, x2, p=2.0, *, tb=None, td=None):
    """Pallas TPU implementation of PairwiseDistance(p).forward(x1, x2) for (B, D) inputs."""
    assert x1.shape == x2.shape, "x1 and x2 must have the same shape"
    assert x1.ndim == 2, "only (batch, feature) inputs are supported"
    B, D = x1.shape
    eps = 0.0001 / D
    p = float(p)
    out_dtype = x1.dtype
    itemsize = jnp.dtype(x1.dtype).itemsize
    out_itemsize = jnp.dtype(out_dtype).itemsize

    # Generation-aware VMEM budget (2 inputs x 2 pipeline buffers per block + headroom).
    vmem_cap = _vmem_capacity_bytes()
    vmem_limit = min((vmem_cap * 3) // 4, 96 * 1024 * 1024)
    per_block_budget = min(vmem_limit // 4 - (1 << 20), 16 * 1024 * 1024)
    if itemsize < 4:
        per_block_budget //= 2           # leave room for the f32 upcast intermediates

    auto_tb, auto_td = _choose_tiles(B, D, itemsize, per_block_budget)
    tb = auto_tb if tb is None else int(tb)
    td = auto_td if td is None else int(td)
    td = min(td, D)
    assert tb % 8 == 0, "batch tile must be sublane-aligned (multiple of 8)"
    if td < D:
        assert td % 128 == 0, "feature tiles must be lane-aligned (multiple of 128)"

    bt = pl.cdiv(B, tb)                  # ragged last batch block: OOB rows read garbage,
    kt = 1 if td >= D else pl.cdiv(D, td)  # their output rows are OOB and dropped.

    bytes_accessed = 2 * B * D * itemsize + B * out_itemsize
    flops = 3 * B * D
    transcendentals = B if p in (1.0, 2.0) else 2 * B * D + B

    if kt == 1:
        kernel = functools.partial(_pairwise_distance_kernel_single, p=p, eps=eps)
        grid = (bt,)
        in_specs = [
            pl.BlockSpec((tb, D), lambda i: (i, 0)),   # full-D last dim: exempt from 128 rule
            pl.BlockSpec((tb, D), lambda i: (i, 0)),
        ]
        out_specs = pl.BlockSpec((tb, 1), lambda i: (i, 0))
        scratch_shapes = []
        dim_sem = ("parallel",)
    else:
        kernel = functools.partial(
            _pairwise_distance_kernel_acc, p=p, eps=eps,
            d_total=D, td=td, mask_last=(D % td != 0))
        grid = (bt, kt)
        in_specs = [
            pl.BlockSpec((tb, td), lambda i, k: (i, k)),
            pl.BlockSpec((tb, td), lambda i, k: (i, k)),
        ]
        out_specs = pl.BlockSpec((tb, 1), lambda i, k: (i, 0))
        scratch_shapes = [pltpu.VMEM((tb, 128), jnp.float32)]
        dim_sem = ("parallel", "arbitrary")

    out = pl.pallas_call(
        kernel,
        out_shape=jax.ShapeDtypeStruct((B, 1), out_dtype),
        grid_spec=pltpu.PrefetchScalarGridSpec(
            num_scalar_prefetch=0,
            grid=grid,
            in_specs=in_specs,
            out_specs=out_specs,
            scratch_shapes=scratch_shapes,
        ),
        compiler_params=pltpu.CompilerParams(
            dimension_semantics=dim_sem,
            vmem_limit_bytes=int(vmem_limit),
        ),
        cost_estimate=pl.CostEstimate(
            flops=int(flops),
            transcendentals=int(transcendentals),
            bytes_accessed=int(bytes_accessed),
        ),
    )(x1, x2)
    return out[:, 0]                     # (B,) to match torch's sum(dim=1) rank


def _reference(x1, x2, p):
    eps = 0.0001 / x1.shape[1]
    diff = jnp.abs(x1.astype(jnp.float32) - x2.astype(jnp.float32))
    out = jnp.sum(diff ** p, axis=1)
    out = jnp.maximum(out, 0.0)
    return (out + eps) ** (1.0 / p)


if __name__ == "__main__":
    key = jax.random.PRNGKey(0)

    checks = [
        dict(B=8, D=32, p=2.0),                    # p=2 fast path, single-pass kernel
        dict(B=10, D=40, p=1.0),                   # p=1, ragged batch block (B % tb != 0)
        dict(B=8, D=32, p=3.0),                    # generic-p path
        dict(B=16, D=300, p=2.0, tb=8, td=128),    # forced feature tiling + ragged-D mask
    ]
    for cfg in checks:
        B, D, p = cfg["B"], cfg["D"], cfg["p"]
        key, k1, k2 = jax.random.split(key, 3)
        x1 = jax.random.normal(k1, (B, D), dtype=jnp.float32)
        x2 = jax.random.normal(k2, (B, D), dtype=jnp.float32)

        got = jax.block_until_ready(
            pairwise_distance(x1, x2, p=p, tb=cfg.get("tb"), td=cfg.get("td")))
        want = _reference(x1, x2, p)

        assert got.shape == (B,), (got.shape, B)
        assert jnp.allclose(got, want, rtol=1e-4, atol=1e-5), (p, got, want)

    print("KERNEL_OK")
</pallas_src>

<mosaic_0001>
module attributes {stable_mosaic.version = 11 : i64} {
  func.func @_pairwise_distance_kernel_single(%arg0: i32, %arg1: memref<8x32xf32, #tpu.memory_space<vmem>>, %arg2: memref<8x32xf32, #tpu.memory_space<vmem>>, %arg3: memref<8x1xf32, #tpu.memory_space<vmem>>) attributes {dimension_semantics = [#tpu.dimension_semantics<parallel>], iteration_bounds = array<i64: 1>, scalar_prefetch = 0 : i64, scratch_operands = 0 : i64, tpu.core_type = #tpu.core_type<tc>, window_params = [{transform_indices = @transform_0, window_bounds = array<i64: 8, 32>}, {transform_indices = @transform_1, window_bounds = array<i64: 8, 32>}, {transform_indices = @transform_2, window_bounds = array<i64: 8, 1>}]} {
    %c0 = arith.constant 0 : index
    %c0_0 = arith.constant 0 : index
    %0 = vector.load %arg1[%c0, %c0_0] : memref<8x32xf32, #tpu.memory_space<vmem>>, vector<8x32xf32>
    %c0_1 = arith.constant 0 : index
    %c0_2 = arith.constant 0 : index
    %1 = vector.load %arg2[%c0_1, %c0_2] : memref<8x32xf32, #tpu.memory_space<vmem>>, vector<8x32xf32>
    %2 = arith.subf %0, %1 : vector<8x32xf32>
    %3 = arith.mulf %2, %2 : vector<8x32xf32>
    %cst = arith.constant dense<0.000000e+00> : vector<8xf32>
    %4 = vector.multi_reduction <add>, %3, %cst [1] : vector<8x32xf32> to vector<8xf32>
    %5 = vector.shape_cast %4 : vector<8xf32> to vector<8x1xf32>
    %cst_3 = arith.constant 3.125000e-06 : f32
    %6 = vector.broadcast %cst_3 : f32 to vector<8x1xf32>
    %7 = arith.addf %5, %6 : vector<8x1xf32>
    %8 = math.sqrt %7 : vector<8x1xf32>
    %c0_4 = arith.constant 0 : index
    %c0_5 = arith.constant 0 : index
    %9 = vector.load %arg3[%c0_4, %c0_5] : memref<8x1xf32, #tpu.memory_space<vmem>>, vector<8x1xf32>
    tpu.vector_store %arg3[%c0_4, %c0_5], %8 {strides = array<i32>} : memref<8x1xf32, #tpu.memory_space<vmem>>, vector<8x1xf32>,
    return
  }
  func.func @transform_0(%arg0: i32) -> (i32, i32) {
    %c0_i32 = arith.constant 0 : i32
    %c0_i32_0 = arith.constant 0 : i32
    return %arg0, %c0_i32 : i32, i32
  }
  func.func @transform_1(%arg0: i32) -> (i32, i32) {
    %c0_i32 = arith.constant 0 : i32
    %c0_i32_0 = arith.constant 0 : i32
    return %arg0, %c0_i32 : i32, i32
  }
  func.func @transform_2(%arg0: i32) -> (i32, i32) {
    %c0_i32 = arith.constant 0 : i32
    %c0_i32_0 = arith.constant 0 : i32
    return %arg0, %c0_i32 : i32, i32
  }
}

</mosaic_0001>

<llo_original>
// kernel: tpu_custom_call.1
$region0: #{tpu_custom_call.1}
  #allocation0 [shape = 'u32[]', space=smem, size = 0x4, offset = 0x4, fixed_abs, tag = 'smem constant byte address 0x4 - core index']
  #allocation1 [shape = 'u32[144,128]{1,0:T(1,128)}', space=vmem, size = 0x12000, scoped, tag = 'internal scratch']
  %s0 = inlined_call_operand.hbm [shape: f32[8,32], index: 0, kind: input, shape index: {}]
  %s1 = inlined_call_operand.hbm [shape: f32[8,32], index: 1, kind: input, shape index: {}]
  %s2 = inlined_call_operand.vmem [shape: f32[8,1], index: 2, kind: output, shape index: {}]
  %s3 = sld [smem:[#allocation0]]
  $region26: #{tpu_custom_call.1} parent=0
    _
  %s5 = ssub.s32 1, %s3
  %s6 = scalar_select 0, %s5, %s3
  $region1: #{tpu_custom_call.1} parent=0
    #allocation2 [shape = 'u8[4096]{0}', space=vmem, size = 0x1000, scoped, tag = 'input window, operand 0, single buffered']
    #allocation3 [shape = 's32[1]{0}', space=sflag, size = 0x4, scoped, tag = 'scoped memory for tpu_custom_call.1']
    #allocation4 [shape = 'u8[4096]{0}', space=vmem, size = 0x1000, scoped, tag = 'input window, operand 1, single buffered']
    #allocation5 [shape = 's32[1]{0}', space=sflag, size = 0x4, scoped, tag = 'scoped memory for tpu_custom_call.1']
    %7 = vsyncpa [#allocation3], 0
    %8 = vsyncpa [#allocation5], 0
    // Predicated region
    $region2: #{tpu_custom_call.1} parent=1 // pred_check
      _
    $region3: #{tpu_custom_call.1} parent=1 // pred_check_branch
      %10 = sbr.rel (0) target = $region5
    $region4: #{tpu_custom_call.1} parent=1 // pred_region
      %s12 = ssub.s32 128, 128
      %13 = vsyncadd [#allocation3], %s12
      %s15 = sshll.u32 [#allocation2], 4
      %s16 = int_to_ptr.vmem [resolvable:$true] %s15
      %18 = dma.hbm_to_vmem [thread:$0]  %s0, 128, %s16, [#allocation3]
    $region5: #{tpu_custom_call.1} parent=1 // pred_fallthru
      _
    // Predicated region
    $region6: #{tpu_custom_call.1} parent=1 // pred_check
      _
    $region7: #{tpu_custom_call.1} parent=1 // pred_check_branch
      %20 = sbr.rel (0) target = $region9
    $region8: #{tpu_custom_call.1} parent=1 // pred_region
      %s22 = ssub.s32 128, 128
      %23 = vsyncadd [#allocation5], %s22
      %s25 = sshll.u32 [#allocation4], 4
      %s26 = int_to_ptr.vmem [resolvable:$true] %s25
      %28 = dma.hbm_to_vmem [thread:$0]  %s1, 128, %s26, [#allocation5]
    $region9: #{tpu_custom_call.1} parent=1 // pred_fallthru
      _
    // Predicated region
    $region10: #{tpu_custom_call.1} parent=1 // pred_check
      _
    $region11: #{tpu_custom_call.1} parent=1 // pred_check_branch
      %30 = sbr.rel (0) target = $region13
    $region12: #{tpu_custom_call.1} parent=1 // pred_region
      %31 = dma.done [#allocation3], 128
    $region13: #{tpu_custom_call.1} parent=1 // pred_fallthru
      _
    // Predicated region
    $region14: #{tpu_custom_call.1} parent=1 // pred_check
      _
    $region15: #{tpu_custom_call.1} parent=1 // pred_check_branch
      %33 = sbr.rel (0) target = $region17
    $region16: #{tpu_custom_call.1} parent=1 // pred_region
      %34 = dma.done [#allocation5], 128
    $region17: #{tpu_custom_call.1} parent=1 // pred_fallthru
      _
    %v35 = vld [vmem:[#allocation2] sm:$0xff]
    %v36 = vld [vmem:[#allocation4] sm:$0xff]
    %v37 = vsub.f32 %v35, %v36
    %v38 = vmul.f32 %v37, %v37
    %vm39 = vcmask 261120
    %v40 = vsel %vm39, %v38, 0.0
    %41 = vadd.xlane.f32.xlu0 %v40
    %v42 = vpop.xlane.xlu0 %41
    %v43 = vadd.f32 %v42, 3.125e-06
    %v44 = vrsqrt.pop %v43
    %v45 = vmul.f32 %v43, %v44
    %vm46 = vcmp.eq.f32.partialorder %v43, inf
    %v47 = vsel %vm46, %v43, %v45
    %vm48 = vcmp.eq.f32.partialorder %v43, 0.0
    %v49 = vand.u32 %v43, 2147483648
    %v50 = vsel %vm48, %v49, %v47
    %vm51 = vcmask 7168
    %52 = vst.msk [vmem:[%s2] sm:$0xff] %vm51, %v50
    // Predicated region
    $region18: #{tpu_custom_call.1} parent=1 // pred_check
      _
    $region19: #{tpu_custom_call.1} parent=1 // pred_check_branch
      %54 = sbr.rel (0) target = $region21
    $region20: #{tpu_custom_call.1} parent=1 // pred_region
      _
    $region21: #{tpu_custom_call.1} parent=1 // pred_fallthru
      _
    // Predicated region
    $region22: #{tpu_custom_call.1} parent=1 // pred_check
      _
    $region23: #{tpu_custom_call.1} parent=1 // pred_check_branch
      %56 = sbr.rel (0) target = $region25
    $region24: #{tpu_custom_call.1} parent=1 // pred_region
      _
    $region25: #{tpu_custom_call.1} parent=1 // pred_fallthru
      _
    %57 = vsyncpa [#allocation3], 1
    %58 = vsyncpa [#allocation5], 1

</llo_original>
